<compile_context>
chip_gen: v6e
topology: v6e:2x2x1
jax: 0.10.0
libtpu: 0.0.40
codegen_flags: <defaults>
</compile_context>

<pallas_src>
import functools

import jax
import jax.numpy as jnp
from jax.experimental import pallas as pl
from jax.experimental.pallas import tpu as pltpu


def _round_up(x, m):
    return ((x + m - 1) // m) * m


def mlp_kernel(xT_ref, w1_ref, b1_ref, w2_ref, b2_ref, oT_ref):
    # Kernel-side layouts (batch on the lane axis):
    #   xT : (in_dim, TB)        w1 : (hidden, in_dim)    b1 : (hidden, 1)
    #   oT : (out_dim, TB)       w2 : (out_dim, hidden)   b2 : (out_dim, 1)
    xT = xT_ref[...]
    w1 = w1_ref[...]
    w2 = w2_ref[...]
    in_dim = xT.shape[0]
    hidden = w1.shape[0]

    # Layer 1: h[j, :] = sum_i w1[j, i] * x[i, :] + b1[j]   (VPU broadcast-FMA, K = in_dim)
    h = w1[:, 0:1] * xT[0:1, :]                       # (hidden, 1) * (1, TB) -> (hidden, TB)
    for i in range(1, in_dim):
        h = h + w1[:, i:i + 1] * xT[i:i + 1, :]
    h = jnp.maximum(h + b1_ref[...], 0.0)             # ReLU, (hidden, TB)

    # Layer 2: o[k, :] = sum_j w2[k, j] * h[j, :] + b2[k]   (VPU broadcast-FMA, K = hidden)
    o = w2[:, 0:1] * h[0:1, :]                        # (out_dim, 1) * (1, TB) -> (out_dim, TB)
    for j in range(1, hidden):
        o = o + w2[:, j:j + 1] * h[j:j + 1, :]
    oT_ref[...] = (o + b2_ref[...]).astype(oT_ref.dtype)


@functools.partial(jax.jit, static_argnames=("block_batch",))
def auto_park_forward(x, w1, b1, w2, b2, *, block_batch=4096):
    """Forward pass of AutoParkModel.

    x : (batch, in_dim) f32
    w1: (hidden_dim, in_dim)   -- PyTorch nn.Linear weight layout
    b1: (hidden_dim,)
    w2: (out_dim, hidden_dim)  -- PyTorch nn.Linear weight layout
    b2: (out_dim,)
    returns (batch, out_dim) f32
    """
    batch, in_dim = x.shape
    hidden_dim = w1.shape[0]
    out_dim = w2.shape[0]

    # Batch tile: the lane (last) axis of each block must be a multiple of 128.
    tb = min(block_batch, _round_up(batch, 128))
    padded = _round_up(batch, tb)
    grid = padded // tb

    # Transpose to batch-on-lanes layout and zero-pad batch up to the tile grid.
    xT = jnp.pad(x.T, ((0, 0), (0, padded - batch)))          # (in_dim, padded)
    b1c = b1.reshape(hidden_dim, 1)
    b2c = b2.reshape(out_dim, 1)

    flops = 2 * batch * (in_dim * hidden_dim + hidden_dim * out_dim)
    bytes_accessed = 4 * (batch * (in_dim + out_dim)
                          + w1.size + b1.size + w2.size + b2.size)

    oT = pl.pallas_call(
        mlp_kernel,
        out_shape=jax.ShapeDtypeStruct((out_dim, padded), jnp.float32),
        grid=(grid,),
        in_specs=[
            pl.BlockSpec((in_dim, tb), lambda i: (0, i)),        # x tile streams with the grid
            pl.BlockSpec((hidden_dim, in_dim), lambda i: (0, 0)),  # weights stay resident
            pl.BlockSpec((hidden_dim, 1), lambda i: (0, 0)),
            pl.BlockSpec((out_dim, hidden_dim), lambda i: (0, 0)),
            pl.BlockSpec((out_dim, 1), lambda i: (0, 0)),
        ],
        out_specs=pl.BlockSpec((out_dim, tb), lambda i: (0, i)),
        compiler_params=pltpu.CompilerParams(
            dimension_semantics=("parallel",),       # megacore sharding on v7x
            vmem_limit_bytes=32 * 1024 * 1024,
        ),
        cost_estimate=pl.CostEstimate(
            flops=flops, transcendentals=0, bytes_accessed=bytes_accessed),
    )(xT, w1, b1c, w2, b2c)

    # Back to (batch, out_dim), dropping batch padding.
    return oT[:, :batch].T


if __name__ == "__main__":
    key = jax.random.PRNGKey(0)
    k_x, k1, k2, k3, k4 = jax.random.split(key, 5)

    batch, in_dim, hidden_dim, out_dim = 8, 2, 20, 4
    x = jax.random.normal(k_x, (batch, in_dim), jnp.float32)

    # Deterministic init mimicking PyTorch's default Linear init (U(-1/sqrt(fan_in), +)).
    bound1 = 1.0 / (in_dim ** 0.5)
    bound2 = 1.0 / (hidden_dim ** 0.5)
    w1 = jax.random.uniform(k1, (hidden_dim, in_dim), jnp.float32, -bound1, bound1)
    b1 = jax.random.uniform(k2, (hidden_dim,), jnp.float32, -bound1, bound1)
    w2 = jax.random.uniform(k3, (out_dim, hidden_dim), jnp.float32, -bound2, bound2)
    b2 = jax.random.uniform(k4, (out_dim,), jnp.float32, -bound2, bound2)

    out = auto_park_forward(x, w1, b1, w2, b2)
    out = jax.block_until_ready(out)

    # Reference check in plain JAX (same math as the PyTorch module).
    ref = jnp.maximum(x @ w1.T + b1, 0.0) @ w2.T + b2
    assert out.shape == (batch, out_dim)
    assert jnp.allclose(out, ref, atol=1e-5, rtol=1e-5)

    print("KERNEL_OK")
</pallas_src>

<mosaic_0001>
module attributes {stable_mosaic.version = 11 : i64} {
  func.func @mlp_kernel(%arg0: i32, %arg1: memref<2x128xf32, #tpu.memory_space<vmem>>, %arg2: memref<20x2xf32, #tpu.memory_space<vmem>>, %arg3: memref<20x1xf32, #tpu.memory_space<vmem>>, %arg4: memref<4x20xf32, #tpu.memory_space<vmem>>, %arg5: memref<4x1xf32, #tpu.memory_space<vmem>>, %arg6: memref<4x128xf32, #tpu.memory_space<vmem>>) attributes {dimension_semantics = [#tpu.dimension_semantics<parallel>], iteration_bounds = array<i64: 1>, scalar_prefetch = 0 : i64, scratch_operands = 0 : i64, tpu.core_type = #tpu.core_type<tc>, window_params = [{transform_indices = @transform_0, window_bounds = array<i64: 2, 128>}, {pipeline_mode = #tpu.pipeline_mode<synchronous>, transform_indices = @transform_1, window_bounds = array<i64: 20, 2>}, {pipeline_mode = #tpu.pipeline_mode<synchronous>, transform_indices = @transform_2, window_bounds = array<i64: 20, 1>}, {pipeline_mode = #tpu.pipeline_mode<synchronous>, transform_indices = @transform_3, window_bounds = array<i64: 4, 20>}, {pipeline_mode = #tpu.pipeline_mode<synchronous>, transform_indices = @transform_4, window_bounds = array<i64: 4, 1>}, {transform_indices = @transform_5, window_bounds = array<i64: 4, 128>}]} {
    %c0 = arith.constant 0 : index
    %c0_0 = arith.constant 0 : index
    %0 = vector.load %arg1[%c0, %c0_0] : memref<2x128xf32, #tpu.memory_space<vmem>>, vector<2x128xf32>
    %c0_1 = arith.constant 0 : index
    %c0_2 = arith.constant 0 : index
    %1 = vector.load %arg2[%c0_1, %c0_2] : memref<20x2xf32, #tpu.memory_space<vmem>>, vector<20x2xf32>
    %c0_3 = arith.constant 0 : index
    %c0_4 = arith.constant 0 : index
    %2 = vector.load %arg4[%c0_3, %c0_4] : memref<4x20xf32, #tpu.memory_space<vmem>>, vector<4x20xf32>
    %3 = vector.extract_strided_slice %1 {offsets = [0, 0], sizes = [20, 1], strides = [1, 1]} : vector<20x2xf32> to vector<20x1xf32>
    %4 = vector.extract_strided_slice %0 {offsets = [0, 0], sizes = [1, 128], strides = [1, 1]} : vector<2x128xf32> to vector<1x128xf32>
    %5 = vector.broadcast %3 : vector<20x1xf32> to vector<20x128xf32>
    %6 = vector.broadcast %4 : vector<1x128xf32> to vector<20x128xf32>
    %7 = arith.mulf %5, %6 : vector<20x128xf32>
    %8 = vector.extract_strided_slice %1 {offsets = [0, 1], sizes = [20, 1], strides = [1, 1]} : vector<20x2xf32> to vector<20x1xf32>
    %9 = vector.extract_strided_slice %0 {offsets = [1, 0], sizes = [1, 128], strides = [1, 1]} : vector<2x128xf32> to vector<1x128xf32>
    %10 = vector.broadcast %8 : vector<20x1xf32> to vector<20x128xf32>
    %11 = vector.broadcast %9 : vector<1x128xf32> to vector<20x128xf32>
    %12 = arith.mulf %10, %11 : vector<20x128xf32>
    %13 = arith.addf %7, %12 : vector<20x128xf32>
    %c0_5 = arith.constant 0 : index
    %c0_6 = arith.constant 0 : index
    %14 = vector.load %arg3[%c0_5, %c0_6] : memref<20x1xf32, #tpu.memory_space<vmem>>, vector<20x1xf32>
    %15 = vector.broadcast %14 : vector<20x1xf32> to vector<20x128xf32>
    %16 = arith.addf %13, %15 : vector<20x128xf32>
    %cst = arith.constant 0.000000e+00 : f32
    %17 = vector.broadcast %cst : f32 to vector<20x128xf32>
    %18 = arith.maximumf %16, %17 : vector<20x128xf32>
    %19 = vector.extract_strided_slice %2 {offsets = [0, 0], sizes = [4, 1], strides = [1, 1]} : vector<4x20xf32> to vector<4x1xf32>
    %20 = vector.extract_strided_slice %18 {offsets = [0, 0], sizes = [1, 128], strides = [1, 1]} : vector<20x128xf32> to vector<1x128xf32>
    %21 = vector.broadcast %19 : vector<4x1xf32> to vector<4x128xf32>
    %22 = vector.broadcast %20 : vector<1x128xf32> to vector<4x128xf32>
    %23 = arith.mulf %21, %22 : vector<4x128xf32>
    %24 = vector.extract_strided_slice %2 {offsets = [0, 1], sizes = [4, 1], strides = [1, 1]} : vector<4x20xf32> to vector<4x1xf32>
    %25 = vector.extract_strided_slice %18 {offsets = [1, 0], sizes = [1, 128], strides = [1, 1]} : vector<20x128xf32> to vector<1x128xf32>
    %26 = vector.broadcast %24 : vector<4x1xf32> to vector<4x128xf32>
    %27 = vector.broadcast %25 : vector<1x128xf32> to vector<4x128xf32>
    %28 = arith.mulf %26, %27 : vector<4x128xf32>
    %29 = arith.addf %23, %28 : vector<4x128xf32>
    %30 = vector.extract_strided_slice %2 {offsets = [0, 2], sizes = [4, 1], strides = [1, 1]} : vector<4x20xf32> to vector<4x1xf32>
    %31 = vector.extract_strided_slice %18 {offsets = [2, 0], sizes = [1, 128], strides = [1, 1]} : vector<20x128xf32> to vector<1x128xf32>
    %32 = vector.broadcast %30 : vector<4x1xf32> to vector<4x128xf32>
    %33 = vector.broadcast %31 : vector<1x128xf32> to vector<4x128xf32>
    %34 = arith.mulf %32, %33 : vector<4x128xf32>
    %35 = arith.addf %29, %34 : vector<4x128xf32>
    %36 = vector.extract_strided_slice %2 {offsets = [0, 3], sizes = [4, 1], strides = [1, 1]} : vector<4x20xf32> to vector<4x1xf32>
    %37 = vector.extract_strided_slice %18 {offsets = [3, 0], sizes = [1, 128], strides = [1, 1]} : vector<20x128xf32> to vector<1x128xf32>
    %38 = vector.broadcast %36 : vector<4x1xf32> to vector<4x128xf32>
    %39 = vector.broadcast %37 : vector<1x128xf32> to vector<4x128xf32>
    %40 = arith.mulf %38, %39 : vector<4x128xf32>
    %41 = arith.addf %35, %40 : vector<4x128xf32>
    %42 = vector.extract_strided_slice %2 {offsets = [0, 4], sizes = [4, 1], strides = [1, 1]} : vector<4x20xf32> to vector<4x1xf32>
    %43 = vector.extract_strided_slice %18 {offsets = [4, 0], sizes = [1, 128], strides = [1, 1]} : vector<20x128xf32> to vector<1x128xf32>
    %44 = vector.broadcast %42 : vector<4x1xf32> to vector<4x128xf32>
    %45 = vector.broadcast %43 : vector<1x128xf32> to vector<4x128xf32>
    %46 = arith.mulf %44, %45 : vector<4x128xf32>
    %47 = arith.addf %41, %46 : vector<4x128xf32>
    %48 = vector.extract_strided_slice %2 {offsets = [0, 5], sizes = [4, 1], strides = [1, 1]} : vector<4x20xf32> to vector<4x1xf32>
    %49 = vector.extract_strided_slice %18 {offsets = [5, 0], sizes = [1, 128], strides = [1, 1]} : vector<20x128xf32> to vector<1x128xf32>
    %50 = vector.broadcast %48 : vector<4x1xf32> to vector<4x128xf32>
    %51 = vector.broadcast %49 : vector<1x128xf32> to vector<4x128xf32>
    %52 = arith.mulf %50, %51 : vector<4x128xf32>
    %53 = arith.addf %47, %52 : vector<4x128xf32>
    %54 = vector.extract_strided_slice %2 {offsets = [0, 6], sizes = [4, 1], strides = [1, 1]} : vector<4x20xf32> to vector<4x1xf32>
    %55 = vector.extract_strided_slice %18 {offsets = [6, 0], sizes = [1, 128], strides = [1, 1]} : vector<20x128xf32> to vector<1x128xf32>
    %56 = vector.broadcast %54 : vector<4x1xf32> to vector<4x128xf32>
    %57 = vector.broadcast %55 : vector<1x128xf32> to vector<4x128xf32>
    %58 = arith.mulf %56, %57 : vector<4x128xf32>
    %59 = arith.addf %53, %58 : vector<4x128xf32>
    %60 = vector.extract_strided_slice %2 {offsets = [0, 7], sizes = [4, 1], strides = [1, 1]} : vector<4x20xf32> to vector<4x1xf32>
    %61 = vector.extract_strided_slice %18 {offsets = [7, 0], sizes = [1, 128], strides = [1, 1]} : vector<20x128xf32> to vector<1x128xf32>
    %62 = vector.broadcast %60 : vector<4x1xf32> to vector<4x128xf32>
    %63 = vector.broadcast %61 : vector<1x128xf32> to vector<4x128xf32>
    %64 = arith.mulf %62, %63 : vector<4x128xf32>
    %65 = arith.addf %59, %64 : vector<4x128xf32>
    %66 = vector.extract_strided_slice %2 {offsets = [0, 8], sizes = [4, 1], strides = [1, 1]} : vector<4x20xf32> to vector<4x1xf32>
    %67 = vector.extract_strided_slice %18 {offsets = [8, 0], sizes = [1, 128], strides = [1, 1]} : vector<20x128xf32> to vector<1x128xf32>
    %68 = vector.broadcast %66 : vector<4x1xf32> to vector<4x128xf32>
    %69 = vector.broadcast %67 : vector<1x128xf32> to vector<4x128xf32>
    %70 = arith.mulf %68, %69 : vector<4x128xf32>
    %71 = arith.addf %65, %70 : vector<4x128xf32>
    %72 = vector.extract_strided_slice %2 {offsets = [0, 9], sizes = [4, 1], strides = [1, 1]} : vector<4x20xf32> to vector<4x1xf32>
    %73 = vector.extract_strided_slice %18 {offsets = [9, 0], sizes = [1, 128], strides = [1, 1]} : vector<20x128xf32> to vector<1x128xf32>
    %74 = vector.broadcast %72 : vector<4x1xf32> to vector<4x128xf32>
    %75 = vector.broadcast %73 : vector<1x128xf32> to vector<4x128xf32>
    %76 = arith.mulf %74, %75 : vector<4x128xf32>
    %77 = arith.addf %71, %76 : vector<4x128xf32>
    %78 = vector.extract_strided_slice %2 {offsets = [0, 10], sizes = [4, 1], strides = [1, 1]} : vector<4x20xf32> to vector<4x1xf32>
    %79 = vector.extract_strided_slice %18 {offsets = [10, 0], sizes = [1, 128], strides = [1, 1]} : vector<20x128xf32> to vector<1x128xf32>
    %80 = vector.broadcast %78 : vector<4x1xf32> to vector<4x128xf32>
    %81 = vector.broadcast %79 : vector<1x128xf32> to vector<4x128xf32>
    %82 = arith.mulf %80, %81 : vector<4x128xf32>
    %83 = arith.addf %77, %82 : vector<4x128xf32>
    %84 = vector.extract_strided_slice %2 {offsets = [0, 11], sizes = [4, 1], strides = [1, 1]} : vector<4x20xf32> to vector<4x1xf32>
    %85 = vector.extract_strided_slice %18 {offsets = [11, 0], sizes = [1, 128], strides = [1, 1]} : vector<20x128xf32> to vector<1x128xf32>
    %86 = vector.broadcast %84 : vector<4x1xf32> to vector<4x128xf32>
    %87 = vector.broadcast %85 : vector<1x128xf32> to vector<4x128xf32>
    %88 = arith.mulf %86, %87 : vector<4x128xf32>
    %89 = arith.addf %83, %88 : vector<4x128xf32>
    %90 = vector.extract_strided_slice %2 {offsets = [0, 12], sizes = [4, 1], strides = [1, 1]} : vector<4x20xf32> to vector<4x1xf32>
    %91 = vector.extract_strided_slice %18 {offsets = [12, 0], sizes = [1, 128], strides = [1, 1]} : vector<20x128xf32> to vector<1x128xf32>
    %92 = vector.broadcast %90 : vector<4x1xf32> to vector<4x128xf32>
    %93 = vector.broadcast %91 : vector<1x128xf32> to vector<4x128xf32>
    %94 = arith.mulf %92, %93 : vector<4x128xf32>
    %95 = arith.addf %89, %94 : vector<4x128xf32>
    %96 = vector.extract_strided_slice %2 {offsets = [0, 13], sizes = [4, 1], strides = [1, 1]} : vector<4x20xf32> to vector<4x1xf32>
    %97 = vector.extract_strided_slice %18 {offsets = [13, 0], sizes = [1, 128], strides = [1, 1]} : vector<20x128xf32> to vector<1x128xf32>
    %98 = vector.broadcast %96 : vector<4x1xf32> to vector<4x128xf32>
    %99 = vector.broadcast %97 : vector<1x128xf32> to vector<4x128xf32>
    %100 = arith.mulf %98, %99 : vector<4x128xf32>
    %101 = arith.addf %95, %100 : vector<4x128xf32>
    %102 = vector.extract_strided_slice %2 {offsets = [0, 14], sizes = [4, 1], strides = [1, 1]} : vector<4x20xf32> to vector<4x1xf32>
    %103 = vector.extract_strided_slice %18 {offsets = [14, 0], sizes = [1, 128], strides = [1, 1]} : vector<20x128xf32> to vector<1x128xf32>
    %104 = vector.broadcast %102 : vector<4x1xf32> to vector<4x128xf32>
    %105 = vector.broadcast %103 : vector<1x128xf32> to vector<4x128xf32>
    %106 = arith.mulf %104, %105 : vector<4x128xf32>
    %107 = arith.addf %101, %106 : vector<4x128xf32>
    %108 = vector.extract_strided_slice %2 {offsets = [0, 15], sizes = [4, 1], strides = [1, 1]} : vector<4x20xf32> to vector<4x1xf32>
    %109 = vector.extract_strided_slice %18 {offsets = [15, 0], sizes = [1, 128], strides = [1, 1]} : vector<20x128xf32> to vector<1x128xf32>
    %110 = vector.broadcast %108 : vector<4x1xf32> to vector<4x128xf32>
    %111 = vector.broadcast %109 : vector<1x128xf32> to vector<4x128xf32>
    %112 = arith.mulf %110, %111 : vector<4x128xf32>
    %113 = arith.addf %107, %112 : vector<4x128xf32>
    %114 = vector.extract_strided_slice %2 {offsets = [0, 16], sizes = [4, 1], strides = [1, 1]} : vector<4x20xf32> to vector<4x1xf32>
    %115 = vector.extract_strided_slice %18 {offsets = [16, 0], sizes = [1, 128], strides = [1, 1]} : vector<20x128xf32> to vector<1x128xf32>
    %116 = vector.broadcast %114 : vector<4x1xf32> to vector<4x128xf32>
    %117 = vector.broadcast %115 : vector<1x128xf32> to vector<4x128xf32>
    %118 = arith.mulf %116, %117 : vector<4x128xf32>
    %119 = arith.addf %113, %118 : vector<4x128xf32>
    %120 = vector.extract_strided_slice %2 {offsets = [0, 17], sizes = [4, 1], strides = [1, 1]} : vector<4x20xf32> to vector<4x1xf32>
    %121 = vector.extract_strided_slice %18 {offsets = [17, 0], sizes = [1, 128], strides = [1, 1]} : vector<20x128xf32> to vector<1x128xf32>
    %122 = vector.broadcast %120 : vector<4x1xf32> to vector<4x128xf32>
    %123 = vector.broadcast %121 : vector<1x128xf32> to vector<4x128xf32>
    %124 = arith.mulf %122, %123 : vector<4x128xf32>
    %125 = arith.addf %119, %124 : vector<4x128xf32>
    %126 = vector.extract_strided_slice %2 {offsets = [0, 18], sizes = [4, 1], strides = [1, 1]} : vector<4x20xf32> to vector<4x1xf32>
    %127 = vector.extract_strided_slice %18 {offsets = [18, 0], sizes = [1, 128], strides = [1, 1]} : vector<20x128xf32> to vector<1x128xf32>
    %128 = vector.broadcast %126 : vector<4x1xf32> to vector<4x128xf32>
    %129 = vector.broadcast %127 : vector<1x128xf32> to vector<4x128xf32>
    %130 = arith.mulf %128, %129 : vector<4x128xf32>
    %131 = arith.addf %125, %130 : vector<4x128xf32>
    %132 = vector.extract_strided_slice %2 {offsets = [0, 19], sizes = [4, 1], strides = [1, 1]} : vector<4x20xf32> to vector<4x1xf32>
    %133 = vector.extract_strided_slice %18 {offsets = [19, 0], sizes = [1, 128], strides = [1, 1]} : vector<20x128xf32> to vector<1x128xf32>
    %134 = vector.broadcast %132 : vector<4x1xf32> to vector<4x128xf32>
    %135 = vector.broadcast %133 : vector<1x128xf32> to vector<4x128xf32>
    %136 = arith.mulf %134, %135 : vector<4x128xf32>
    %137 = arith.addf %131, %136 : vector<4x128xf32>
    %c0_7 = arith.constant 0 : index
    %c0_8 = arith.constant 0 : index
    %138 = vector.load %arg5[%c0_7, %c0_8] : memref<4x1xf32, #tpu.memory_space<vmem>>, vector<4x1xf32>
    %139 = vector.broadcast %138 : vector<4x1xf32> to vector<4x128xf32>
    %140 = arith.addf %137, %139 : vector<4x128xf32>
    %c0_9 = arith.constant 0 : index
    %c0_10 = arith.constant 0 : index
    %141 = vector.load %arg6[%c0_9, %c0_10] : memref<4x128xf32, #tpu.memory_space<vmem>>, vector<4x128xf32>
    tpu.vector_store %arg6[%c0_9, %c0_10], %140 {strides = array<i32>} : memref<4x128xf32, #tpu.memory_space<vmem>>, vector<4x128xf32>,
    return
  }
  func.func @transform_0(%arg0: i32) -> (i32, i32) {
    %c0_i32 = arith.constant 0 : i32
    %c0_i32_0 = arith.constant 0 : i32
    return %c0_i32, %arg0 : i32, i32
  }
  func.func @transform_1(%arg0: i32) -> (i32, i32) {
    %c0_i32 = arith.constant 0 : i32
    %c0_i32_0 = arith.constant 0 : i32
    %c0_i32_1 = arith.constant 0 : i32
    return %c0_i32, %c0_i32_0 : i32, i32
  }
  func.func @transform_2(%arg0: i32) -> (i32, i32) {
    %c0_i32 = arith.constant 0 : i32
    %c0_i32_0 = arith.constant 0 : i32
    %c0_i32_1 = arith.constant 0 : i32
    return %c0_i32, %c0_i32_0 : i32, i32
  }
  func.func @transform_3(%arg0: i32) -> (i32, i32) {
    %c0_i32 = arith.constant 0 : i32
    %c0_i32_0 = arith.constant 0 : i32
    %c0_i32_1 = arith.constant 0 : i32
    return %c0_i32, %c0_i32_0 : i32, i32
  }
  func.func @transform_4(%arg0: i32) -> (i32, i32) {
    %c0_i32 = arith.constant 0 : i32
    %c0_i32_0 = arith.constant 0 : i32
    %c0_i32_1 = arith.constant 0 : i32
    return %c0_i32, %c0_i32_0 : i32, i32
  }
  func.func @transform_5(%arg0: i32) -> (i32, i32) {
    %c0_i32 = arith.constant 0 : i32
    %c0_i32_0 = arith.constant 0 : i32
    return %c0_i32, %arg0 : i32, i32
  }
}

</mosaic_0001>

<llo_original>
// kernel: auto_park_forward.1
$region0: #{auto_park_forward.1}
  #allocation0 [shape = 'u32[]', space=smem, size = 0x4, offset = 0x4, fixed_abs, tag = 'smem constant byte address 0x4 - core index']
  #allocation1 [shape = 'u32[144,128]{1,0:T(1,128)}', space=vmem, size = 0x12000, scoped, tag = 'internal scratch']
  %s0 = inlined_call_operand.vmem [shape: f32[2,128], index: 0, kind: input, shape index: {}]
  %s1 = inlined_call_operand.vmem [shape: f32[20,2], index: 1, kind: input, shape index: {}]
  %s2 = inlined_call_operand.vmem [shape: f32[20,1], index: 2, kind: input, shape index: {}]
  %s3 = inlined_call_operand.vmem [shape: f32[4,20], index: 3, kind: input, shape index: {}]
  %s4 = inlined_call_operand.vmem [shape: f32[4,1], index: 4, kind: input, shape index: {}]
  %s5 = inlined_call_operand.vmem [shape: f32[4,128], index: 5, kind: output, shape index: {}]
  %s6 = sld [smem:[#allocation0]]
  $region30: #{auto_park_forward.1} parent=0
    _
  %s8 = ssub.s32 1, %s6
  %s9 = scalar_select 0, %s8, %s6
  // Predicated region
  $region2: #{auto_park_forward.1} parent=0 // pred_check
    _
  $region3: #{auto_park_forward.1} parent=0 // pred_check_branch
    %11 = sbr.rel (0) target = $region5
  $region4: #{auto_park_forward.1} parent=0 // pred_region
    _
  $region5: #{auto_park_forward.1} parent=0 // pred_fallthru
    _
  // Predicated region
  $region6: #{auto_park_forward.1} parent=0 // pred_check
    _
  $region7: #{auto_park_forward.1} parent=0 // pred_check_branch
    %13 = sbr.rel (0) target = $region9
  $region8: #{auto_park_forward.1} parent=0 // pred_region
    _
  $region9: #{auto_park_forward.1} parent=0 // pred_fallthru
    _
  // Predicated region
  $region10: #{auto_park_forward.1} parent=0 // pred_check
    _
  $region11: #{auto_park_forward.1} parent=0 // pred_check_branch
    %15 = sbr.rel (0) target = $region13
  $region12: #{auto_park_forward.1} parent=0 // pred_region
    _
  $region13: #{auto_park_forward.1} parent=0 // pred_fallthru
    _
  // Predicated region
  $region14: #{auto_park_forward.1} parent=0 // pred_check
    _
  $region15: #{auto_park_forward.1} parent=0 // pred_check_branch
    %17 = sbr.rel (0) target = $region17
  $region16: #{auto_park_forward.1} parent=0 // pred_region
    _
  $region17: #{auto_park_forward.1} parent=0 // pred_fallthru
    _
  // Predicated region
  $region18: #{auto_park_forward.1} parent=0 // pred_check
    _
  $region19: #{auto_park_forward.1} parent=0 // pred_check_branch
    %19 = sbr.rel (0) target = $region21
  $region20: #{auto_park_forward.1} parent=0 // pred_region
    _
  $region21: #{auto_park_forward.1} parent=0 // pred_fallthru
    _
  %v20 = vld [vmem:[%s0] sm:$0x3]
  %v21 = vld [vmem:[%s1] sm:$0xff]
  %v22 = vld [vmem:[%s1 + $0x8] sm:$0xff]
  %v23 = vld [vmem:[%s1 + $0x10] sm:$0xf]
  %v24 = vld [vmem:[%s3] sm:$0xf]
  %26 = vset.pattern.permute.xlu0 0
  %27 = vperm.xlu0 %26, %v21
  %v28 = vpop.permute.xlu0 %27
  %31 = vset.pattern.permute.xlu0 0
  %32 = vperm.xlu0 %31, %v22
  %v33 = vpop.permute.xlu0 %32
  %36 = vset.pattern.permute.xlu0 0
  %37 = vperm.xlu0 %36, %v23
  %v38 = vpop.permute.xlu0 %37
  %v40 = vlaneseq
  %v41 = vshrl.u32 %v40, 7
  %v42 = vsub.s32 0, %v41
  %v43 = vrot.slane %v20, %v42
  %v44 = vmul.f32 %v28, %v43
  %v45 = vmul.f32 %v33, %v43
  %v46 = vmul.f32 %v38, %v43
  %47 = vset.pattern.permute.xlu0 1
  %48 = vperm.xlu0 %47, %v21
  %v49 = vpop.permute.xlu0 %48
  %51 = vset.pattern.permute.xlu0 1
  %52 = vperm.xlu0 %51, %v22
  %v53 = vpop.permute.xlu0 %52
  %55 = vset.pattern.permute.xlu0 1
  %56 = vperm.xlu0 %55, %v23
  %v57 = vpop.permute.xlu0 %56
  %v59 = vlaneseq
  %v60 = vshrl.u32 %v59, 7
  %v61 = vsub.s32 1, %v60
  %v62 = vrot.slane %v20, %v61
  %v63 = vmul.f32 %v49, %v62
  %v64 = vmul.f32 %v53, %v62
  %v65 = vmul.f32 %v57, %v62
  %v66 = vadd.f32 %v44, %v63
  %v67 = vadd.f32 %v45, %v64
  %v68 = vadd.f32 %v46, %v65
  %v69 = vld [vmem:[%s2] sm:$0xff]
  %v70 = vld [vmem:[%s2 + $0x8] sm:$0xff]
  %v71 = vld [vmem:[%s2 + $0x10] sm:$0xf]
  %73 = vset.pattern.permute.xlu0 0
  %74 = vperm.xlu0 %73, %v69
  %v75 = vpop.permute.xlu0 %74
  %78 = vset.pattern.permute.xlu0 0
  %79 = vperm.xlu0 %78, %v70
  %v80 = vpop.permute.xlu0 %79
  %83 = vset.pattern.permute.xlu0 0
  %84 = vperm.xlu0 %83, %v71
  %v85 = vpop.permute.xlu0 %84
  %v87 = vadd.f32 %v66, %v75
  %v88 = vadd.f32 %v67, %v80
  %v89 = vadd.f32 %v68, %v85
  %v90 = vmax.f32 %v87, 0.0
  %v91 = vmax.f32 %v88, 0.0
  %v92 = vmax.f32 %v89, 0.0
  %94 = vset.pattern.permute.xlu0 0
  %95 = vperm.xlu0 %94, %v24
  %v96 = vpop.permute.xlu0 %95
  %v98 = vlaneseq
  %v99 = vshrl.u32 %v98, 7
  %v100 = vsub.s32 0, %v99
  %v101 = vrot.slane %v90, %v100
  %v102 = vmul.f32 %v96, %v101
  %103 = vset.pattern.permute.xlu0 1
  %104 = vperm.xlu0 %103, %v24
  %v105 = vpop.permute.xlu0 %104
  %v107 = vlaneseq
  %v108 = vshrl.u32 %v107, 7
  %v109 = vsub.s32 1, %v108
  %v110 = vrot.slane %v90, %v109
  %v111 = vmul.f32 %v105, %v110
  %v112 = vadd.f32 %v102, %v111
  %113 = vset.pattern.permute.xlu0 2
  %114 = vperm.xlu0 %113, %v24
  %v115 = vpop.permute.xlu0 %114
  %v117 = vlaneseq
  %v118 = vshrl.u32 %v117, 7
  %v119 = vsub.s32 2, %v118
  %v120 = vrot.slane %v90, %v119
  %v121 = vmul.f32 %v115, %v120
  %v122 = vadd.f32 %v112, %v121
  %123 = vset.pattern.permute.xlu0 3
  %124 = vperm.xlu0 %123, %v24
  %v125 = vpop.permute.xlu0 %124
  %v127 = vlaneseq
  %v128 = vshrl.u32 %v127, 7
  %v129 = vsub.s32 3, %v128
  %v130 = vrot.slane %v90, %v129
  %v131 = vmul.f32 %v125, %v130
  %v132 = vadd.f32 %v122, %v131
  %133 = vset.pattern.permute.xlu0 4
  %134 = vperm.xlu0 %133, %v24
  %v135 = vpop.permute.xlu0 %134
  %v137 = vlaneseq
  %v138 = vshrl.u32 %v137, 7
  %v139 = vsub.s32 4, %v138
  %v140 = vrot.slane %v90, %v139
  %v141 = vmul.f32 %v135, %v140
  %v142 = vadd.f32 %v132, %v141
  %143 = vset.pattern.permute.xlu0 5
  %144 = vperm.xlu0 %143, %v24
  %v145 = vpop.permute.xlu0 %144
  %v147 = vlaneseq
  %v148 = vshrl.u32 %v147, 7
  %v149 = vsub.s32 5, %v148
  %v150 = vrot.slane %v90, %v149
  %v151 = vmul.f32 %v145, %v150
  %v152 = vadd.f32 %v142, %v151
  %153 = vset.pattern.permute.xlu0 6
  %154 = vperm.xlu0 %153, %v24
  %v155 = vpop.permute.xlu0 %154
  %v157 = vlaneseq
  %v158 = vshrl.u32 %v157, 7
  %v159 = vsub.s32 6, %v158
  %v160 = vrot.slane %v90, %v159
  %v161 = vmul.f32 %v155, %v160
  %v162 = vadd.f32 %v152, %v161
  %163 = vset.pattern.permute.xlu0 7
  %164 = vperm.xlu0 %163, %v24
  %v165 = vpop.permute.xlu0 %164
  %v167 = vlaneseq
  %v168 = vshrl.u32 %v167, 7
  %v169 = vsub.s32 7, %v168
  %v170 = vrot.slane %v90, %v169
  %v171 = vmul.f32 %v165, %v170
  %v172 = vadd.f32 %v162, %v171
  %173 = vset.pattern.permute.xlu0 8
  %174 = vperm.xlu0 %173, %v24
  %v175 = vpop.permute.xlu0 %174
  %v177 = vlaneseq
  %v178 = vshrl.u32 %v177, 7
  %v179 = vsub.s32 0, %v178
  %v180 = vrot.slane %v91, %v179
  %v181 = vmul.f32 %v175, %v180
  %v182 = vadd.f32 %v172, %v181
  %183 = vset.pattern.permute.xlu0 9
  %184 = vperm.xlu0 %183, %v24
  %v185 = vpop.permute.xlu0 %184
  %v187 = vlaneseq
  %v188 = vshrl.u32 %v187, 7
  %v189 = vsub.s32 1, %v188
  %v190 = vrot.slane %v91, %v189
  %v191 = vmul.f32 %v185, %v190
  %v192 = vadd.f32 %v182, %v191
  %193 = vset.pattern.permute.xlu0 10
  %194 = vperm.xlu0 %193, %v24
  %v195 = vpop.permute.xlu0 %194
  %v197 = vlaneseq
  %v198 = vshrl.u32 %v197, 7
  %v199 = vsub.s32 2, %v198
  %v200 = vrot.slane %v91, %v199
  %v201 = vmul.f32 %v195, %v200
  %v202 = vadd.f32 %v192, %v201
  %203 = vset.pattern.permute.xlu0 11
  %204 = vperm.xlu0 %203, %v24
  %v205 = vpop.permute.xlu0 %204
  %v207 = vlaneseq
  %v208 = vshrl.u32 %v207, 7
  %v209 = vsub.s32 3, %v208
  %v210 = vrot.slane %v91, %v209
  %v211 = vmul.f32 %v205, %v210
  %v212 = vadd.f32 %v202, %v211
  %213 = vset.pattern.permute.xlu0 12
  %214 = vperm.xlu0 %213, %v24
  %v215 = vpop.permute.xlu0 %214
  %v217 = vlaneseq
  %v218 = vshrl.u32 %v217, 7
  %v219 = vsub.s32 4, %v218
  %v220 = vrot.slane %v91, %v219
  %v221 = vmul.f32 %v215, %v220
  %v222 = vadd.f32 %v212, %v221
  %223 = vset.pattern.permute.xlu0 13
  %224 = vperm.xlu0 %223, %v24
  %v225 = vpop.permute.xlu0 %224
  %v227 = vlaneseq
  %v228 = vshrl.u32 %v227, 7
  %v229 = vsub.s32 5, %v228
  %v230 = vrot.slane %v91, %v229
  %v231 = vmul.f32 %v225, %v230
  %v232 = vadd.f32 %v222, %v231
  %233 = vset.pattern.permute.xlu0 14
  %234 = vperm.xlu0 %233, %v24
  %v235 = vpop.permute.xlu0 %234
  %v237 = vlaneseq
  %v238 = vshrl.u32 %v237, 7
  %v239 = vsub.s32 6, %v238
  %v240 = vrot.slane %v91, %v239
  %v241 = vmul.f32 %v235, %v240
  %v242 = vadd.f32 %v232, %v241
  %243 = vset.pattern.permute.xlu0 15
  %244 = vperm.xlu0 %243, %v24
  %v245 = vpop.permute.xlu0 %244
  %v247 = vlaneseq
  %v248 = vshrl.u32 %v247, 7
  %v249 = vsub.s32 7, %v248
  %v250 = vrot.slane %v91, %v249
  %v251 = vmul.f32 %v245, %v250
  %v252 = vadd.f32 %v242, %v251
  %253 = vset.pattern.permute.xlu0 16
  %254 = vperm.xlu0 %253, %v24
  %v255 = vpop.permute.xlu0 %254
  %v257 = vlaneseq
  %v258 = vshrl.u32 %v257, 7
  %v259 = vsub.s32 0, %v258
  %v260 = vrot.slane %v92, %v259
  %v261 = vmul.f32 %v255, %v260
  %v262 = vadd.f32 %v252, %v261
  %263 = vset.pattern.permute.xlu0 17
  %264 = vperm.xlu0 %263, %v24
  %v265 = vpop.permute.xlu0 %264
  %v267 = vlaneseq
  %v268 = vshrl.u32 %v267, 7
  %v269 = vsub.s32 1, %v268
  %v270 = vrot.slane %v92, %v269
  %v271 = vmul.f32 %v265, %v270
  %v272 = vadd.f32 %v262, %v271
  %273 = vset.pattern.permute.xlu0 18
  %274 = vperm.xlu0 %273, %v24
  %v275 = vpop.permute.xlu0 %274
  %v277 = vlaneseq
  %v278 = vshrl.u32 %v277, 7
  %v279 = vsub.s32 2, %v278
  %v280 = vrot.slane %v92, %v279
  %v281 = vmul.f32 %v275, %v280
  %v282 = vadd.f32 %v272, %v281
  %283 = vset.pattern.permute.xlu0 19
  %284 = vperm.xlu0 %283, %v24
  %v285 = vpop.permute.xlu0 %284
  %v287 = vlaneseq
  %v288 = vshrl.u32 %v287, 7
  %v289 = vsub.s32 3, %v288
  %v290 = vrot.slane %v92, %v289
  %v291 = vmul.f32 %v285, %v290
  %v292 = vadd.f32 %v282, %v291
  %v293 = vld [vmem:[%s4] sm:$0xf]
  %295 = vset.pattern.permute.xlu0 0
  %296 = vperm.xlu0 %295, %v293
  %v297 = vpop.permute.xlu0 %296
  %v299 = vadd.f32 %v292, %v297
  %300 = vst [vmem:[%s5] sm:$0xf] %v299
  // Predicated region
  $region22: #{auto_park_forward.1} parent=0 // pred_check
    _
  $region23: #{auto_park_forward.1} parent=0 // pred_check_branch
    %302 = sbr.rel (0) target = $region25
  $region24: #{auto_park_forward.1} parent=0 // pred_region
    _
  $region25: #{auto_park_forward.1} parent=0 // pred_fallthru
    _
  // Predicated region
  $region26: #{auto_park_forward.1} parent=0 // pred_check
    _
  $region27: #{auto_park_forward.1} parent=0 // pred_check_branch
    %304 = sbr.rel (0) target = $region29
  $region28: #{auto_park_forward.1} parent=0 // pred_region
    _
  $region29: #{auto_park_forward.1} parent=0 // pred_fallthru
    _

</llo_original>
